<compile_context>
chip_gen: v7x
topology: tpu7x:2x2x1
jax: 0.10.0
libtpu: 0.0.40
codegen_flags: <defaults>
</compile_context>

<pallas_src>
import functools

import jax
import jax.numpy as jnp
from jax.experimental import pallas as pl
from jax.experimental.pallas import tpu as pltpu

LN_EPS = 1e-5  # F.layer_norm default eps


def _round_up(a, b):
    return (a + b - 1) // b * b


def _pick_toc(oc_pad, block_oc):
    """Largest multiple of 128 that divides oc_pad and does not exceed block_oc."""
    t = max(128, min(block_oc, oc_pad) // 128 * 128)
    while oc_pad % t:
        t -= 128
    return t


def _ddit_final_kernel(x_ref, scale1_ref, ln_w_ref, w_ref, b_ref, out_ref,
                       xn_ref, *opt_scratch, cache_y: bool):
    """Grid = (m_tile [parallel], oc_tile [arbitrary], cond [arbitrary]).

    LayerNorm of the current x tile is computed only at the first inner step
    (oc == 0 and cond == 0) and cached in xn_ref; all Bc * n_oc inner steps reuse it.
    NOTE: the guard assumes grid order (m, oc, cond) with only the m axis sharded
    across cores -- do not reorder grid axes without updating it.
    """
    oc = pl.program_id(1)
    cond = pl.program_id(2)

    @pl.when(jnp.logical_and(oc == 0, cond == 0))
    def _():
        xf = x_ref[...].astype(jnp.float32)                            # (TM, H)
        mu = jnp.mean(xf, axis=-1, keepdims=True)
        var = jnp.mean(jnp.square(xf - mu), axis=-1, keepdims=True)    # biased (F.layer_norm)
        xn_ref[...] = (xf - mu) * jax.lax.rsqrt(var + LN_EPS) * ln_w_ref[...]

    if cache_y:
        # Cache the modulated + MXU-dtype-cast activations per conditioning row at the first
        # OC tile and reuse them for every subsequent OC tile (vocab-sized heads).
        y_ref = opt_scratch[0]

        @pl.when(oc == 0)
        def _():
            y_ref[cond] = (xn_ref[...] * scale1_ref[cond]).astype(y_ref.dtype)

        y = y_ref[cond]                                                 # (TM, H), MXU dtype
    else:
        y = (xn_ref[...] * scale1_ref[cond]).astype(w_ref.dtype)

    # MXU GEMM with f32 accumulation; shift is pre-folded into b_ref in the wrapper.
    out = jnp.dot(y, w_ref[...], preferred_element_type=jnp.float32)   # (TM, TOC)
    out_ref[0] = (out + b_ref[0]).astype(out_ref.dtype)


def prepare_ddit_final_params(ln_w, ada_w, ada_b, lin_w, lin_b, *, matmul_dtype=jnp.bfloat16):
    """One-time parameter prep, hoisted out of the per-call path.

    PyTorch layouts: ln_w (H,), ada_w (2H, C), ada_b (2H,), lin_w (OC, H), lin_b (OC,).
    lin_w is transposed and padded to a lane-dense (H, OC_pad) layout in the MXU input dtype
    (bf16 by default).  Do this once at init, not per forward call.
    """
    OC, H = lin_w.shape
    OC_pad = _round_up(OC, 128)
    lin_w_p = jnp.zeros((H, OC_pad), matmul_dtype).at[:, :OC].set(
        jnp.asarray(lin_w).T.astype(matmul_dtype))
    lin_b_p = jnp.zeros((1, OC_pad), jnp.float32).at[:, :OC].set(
        jnp.asarray(lin_b).astype(jnp.float32))
    return dict(
        ln_w2=jnp.asarray(ln_w).reshape(1, H).astype(jnp.float32),
        ada_w=jnp.asarray(ada_w).astype(jnp.float32),
        ada_b=jnp.asarray(ada_b).astype(jnp.float32),
        lin_w_p=lin_w_p,
        lin_b_p=lin_b_p,
        out_channels=OC,
    )


@functools.partial(jax.jit,
                   static_argnames=("out_channels", "block_m", "block_oc", "out_dtype"))
def _ddit_final_apply(x, c, ln_w2, ada_w, ada_b, lin_w_p, lin_b_p, *,
                      out_channels, block_m, block_oc, out_dtype):
    # TODO(synk): the 3-D per-token conditioning branch (c.ndim > 2) is not implemented in-kernel.
    B, L, H = x.shape
    Bc = c.shape[0]
    OC = out_channels
    OC_pad = lin_w_p.shape[1]
    matmul_dtype = lin_w_p.dtype

    # ---- hoisted adaLN projection + modulation prep (tiny GEMMs; cheap in XLA).
    mod = c.astype(jnp.float32) @ ada_w.T + ada_b                      # (Bc, 2H)
    shift, scale = mod[:, :H], mod[:, H:]                              # chunk(2): shift first
    scale1 = (1.0 + scale).reshape(Bc, 1, H)                           # held resident in VMEM
    # Fold shift into bias: (xn*(1+s) + shift) @ W + b == (xn*(1+s)) @ W + (shift @ W + b).
    fused_b = (lin_b_p + jnp.dot(shift.astype(lin_w_p.dtype), lin_w_p,
                                 preferred_element_type=jnp.float32)).reshape(Bc, 1, OC_pad)

    # ---- flatten batch*seq so the GEMM has an MXU-sized M dimension; keep x's native dtype.
    M = B * L
    TM = min(block_m, _round_up(M, 8))
    if M > 8 and _round_up(M, TM) == TM:
        # A single m tile would idle one v7x TensorCore; split the (parallel) m axis in two.
        TM = _round_up(-(-M // 2), 8)
    M_pad = _round_up(M, TM)
    x2 = x.reshape(M, H)
    if M_pad != M:
        x2 = jnp.pad(x2, ((0, M_pad - M), (0, 0)))    # zero rows; sliced off below

    TOC = _pick_toc(OC_pad, block_oc)
    n_m, n_oc = M_pad // TM, OC_pad // TOC
    grid = (n_m, n_oc, Bc)

    # Cache modulated activations per conditioning row only when it pays off and fits VMEM.
    w_dsize = jnp.dtype(matmul_dtype).itemsize
    cache_y = (n_oc >= 2) and (Bc * TM * H * w_dsize <= 8 * 1024 * 1024)

    # Deeper weight pipelining when the weight tile changes on every grid step (Bc == 1).
    w_bufs = 2
    lin_w_kwargs = {}
    if Bc == 1 and hasattr(pl, "Buffered"):
        w_bufs = 3
        lin_w_kwargs["pipeline_mode"] = pl.Buffered(3)

    # ---- VMEM budget derived from the actual tile footprint, capped per chip generation.
    o_dsize = jnp.dtype(out_dtype).itemsize
    vmem_bytes = (2 * TM * H * x2.dtype.itemsize       # x tiles (double-buffered)
                  + 2 * Bc * H * 4 + 2 * H * 4         # (1+scale) + ln_w (resident)
                  + w_bufs * H * TOC * w_dsize         # weight tiles
                  + 2 * TOC * 4                        # fused bias tiles
                  + 2 * TM * TOC * o_dsize             # output tiles
                  + TM * H * 4                         # xn scratch
                  + (Bc * TM * H * w_dsize if cache_y else 0))
    phys_vmem = 64 * 1024 * 1024                       # conservative default (v7x)
    try:
        phys_vmem = int(pltpu.get_tpu_info().vmem_capacity_bytes)
    except Exception:
        pass
    vmem_limit = max(16 << 20, min(int(vmem_bytes * 1.25) + (4 << 20), phys_vmem * 3 // 4))

    scratch_shapes = [pltpu.VMEM((TM, H), jnp.float32)]                  # cached LN(x)*ln_w
    if cache_y:
        scratch_shapes.append(pltpu.VMEM((Bc, TM, H), matmul_dtype))     # cached modulated y

    out = pl.pallas_call(
        functools.partial(_ddit_final_kernel, cache_y=cache_y),
        out_shape=jax.ShapeDtypeStruct((Bc, M_pad, OC_pad), out_dtype),
        grid=grid,
        in_specs=[
            pl.BlockSpec((TM, H), lambda m, oc, i: (m, 0)),              # x rows, once per m tile
            pl.BlockSpec((Bc, 1, H), lambda m, oc, i: (0, 0, 0)),        # (1+scale), resident
            pl.BlockSpec((1, H), lambda m, oc, i: (0, 0)),               # LayerNorm weight
            pl.BlockSpec((H, TOC), lambda m, oc, i: (0, oc), **lin_w_kwargs),  # weight tile
            pl.BlockSpec((1, 1, TOC), lambda m, oc, i: (i, 0, oc)),      # fused bias tile
        ],
        out_specs=pl.BlockSpec((1, TM, TOC), lambda m, oc, i: (i, m, oc)),
        scratch_shapes=scratch_shapes,
        compiler_params=pltpu.CompilerParams(
            dimension_semantics=("parallel", "arbitrary", "arbitrary"),
            vmem_limit_bytes=vmem_limit),
    )(x2, scale1, ln_w2, lin_w_p, fused_b)

    if M_pad != M or OC_pad != OC:
        out = out[:, :M, :OC]      # padded M rows carry the fused bias -> must be sliced off
    return out.reshape(Bc, B, L, OC)


def ddit_final_layer(x, c, params, *, block_m=512, block_oc=512, out_dtype=jnp.float32):
    """x: (B, L, H), c: (Bc, C); params from prepare_ddit_final_params.
    Returns (Bc, B, L, OC) exactly as the reference forward (2-D c branch) does."""
    return _ddit_final_apply(
        x, c, params["ln_w2"], params["ada_w"], params["ada_b"],
        params["lin_w_p"], params["lin_b_p"],
        out_channels=params["out_channels"],
        block_m=block_m, block_oc=block_oc, out_dtype=out_dtype)


def reference(x, c, ln_w, ada_w, ada_b, lin_w, lin_b):
    """Pure-JAX transcription of the PyTorch forward (2-D c branch)."""
    mod = (c @ ada_w.T + ada_b)[:, None, :]                  # (Bc, 1, 2H)
    shift, scale = jnp.split(mod, 2, axis=2)                 # (Bc, 1, H) each
    xf = x.astype(jnp.float32)
    mu = xf.mean(-1, keepdims=True)
    var = ((xf - mu) ** 2).mean(-1, keepdims=True)
    xn = (xf - mu) / jnp.sqrt(var + LN_EPS) * ln_w[None, None, :]
    # modulate_fused: x * (1 + scale.unsqueeze(1)) + shift.unsqueeze(1) -> (Bc, B, L, H)
    y = xn * (1.0 + scale[:, None]) + shift[:, None]
    return y @ lin_w.T + lin_b


if __name__ == "__main__":
    def make_inputs(key, B, L, H, C, OC, x_dtype=jnp.float32):
        ks = jax.random.split(key, 6)
        x = jax.random.normal(ks[0], (B, L, H)).astype(x_dtype)
        c = jax.random.normal(ks[1], (B, C), jnp.float32)
        # NOTE: the PyTorch module zero-inits the final linear; use small nonzero values so
        # the kernel path is actually exercised (synthetic test, not a checkpoint load).
        ln_w = 1.0 + 0.1 * jax.random.normal(ks[2], (H,), jnp.float32)
        ada_w = 0.2 * jax.random.normal(ks[3], (2 * H, C), jnp.float32)  # PyTorch (out_f, in_f)
        ada_b = 0.1 * jax.random.normal(ks[4], (2 * H,), jnp.float32)
        lin_w = 0.2 * jax.random.normal(ks[5], (OC, H), jnp.float32)
        lin_b = 0.05 * jnp.arange(OC, dtype=jnp.float32)
        return x, c, ln_w, ada_w, ada_b, lin_w, lin_b

    k1, k2 = jax.random.split(jax.random.PRNGKey(0))

    # --- strict f32 validation at tiny shapes (f32 MXU path, no y-cache, padded-OC slice path).
    B, L, H, C, OC = 2, 8, 32, 16, 12
    x, c, ln_w, ada_w, ada_b, lin_w, lin_b = make_inputs(k1, B, L, H, C, OC)
    params_f32 = prepare_ddit_final_params(ln_w, ada_w, ada_b, lin_w, lin_b,
                                           matmul_dtype=jnp.float32)
    out = jax.block_until_ready(ddit_final_layer(x, c, params_f32))
    ref = reference(x, c, ln_w, ada_w, ada_b, lin_w, lin_b)
    assert out.shape == (B, B, L, OC), out.shape
    assert jnp.allclose(out, ref, atol=1e-4, rtol=1e-4), float(jnp.max(jnp.abs(out - ref)))

    # --- production default: bf16 MXU inputs + bf16 activations, multiple OC tiles (y-cache
    #     active) and no output padding (post-kernel slice is a no-op).
    B, L, H, C, OC = 2, 24, 128, 16, 384
    x, c, ln_w, ada_w, ada_b, lin_w, lin_b = make_inputs(k2, B, L, H, C, OC,
                                                         x_dtype=jnp.bfloat16)
    params_bf16 = prepare_ddit_final_params(ln_w, ada_w, ada_b, lin_w, lin_b)
    out = jax.block_until_ready(ddit_final_layer(x, c, params_bf16, block_m=16, block_oc=128))
    ref = reference(x.astype(jnp.float32), c, ln_w, ada_w, ada_b, lin_w, lin_b)
    assert out.shape == (B, B, L, OC), out.shape
    assert jnp.allclose(out, ref, atol=2e-1, rtol=5e-2), float(jnp.max(jnp.abs(out - ref)))

    print("KERNEL_OK")
</pallas_src>

<mosaic_0001>
module attributes {stable_mosaic.version = 11 : i64} {
  func.func @_ddit_final_kernel(%arg0: i32, %arg1: i32, %arg2: i32, %arg3: memref<8x32xf32, #tpu.memory_space<vmem>>, %arg4: memref<2x1x32xf32, #tpu.memory_space<vmem>>, %arg5: memref<1x32xf32, #tpu.memory_space<vmem>>, %arg6: memref<32x128xf32, #tpu.memory_space<vmem>>, %arg7: memref<1x1x128xf32, #tpu.memory_space<vmem>>, %arg8: memref<1x8x128xf32, #tpu.memory_space<vmem>>, %arg9: memref<8x32xf32, #tpu.memory_space<vmem>>) attributes {dimension_semantics = [#tpu.dimension_semantics<parallel>, #tpu.dimension_semantics<arbitrary>, #tpu.dimension_semantics<arbitrary>], iteration_bounds = array<i64: 2, 1, 2>, scalar_prefetch = 0 : i64, scratch_operands = 1 : i64, tpu.core_type = #tpu.core_type<tc>, window_params = [{transform_indices = @transform_0, window_bounds = array<i64: 8, 32>}, {pipeline_mode = #tpu.pipeline_mode<synchronous>, transform_indices = @transform_1, window_bounds = array<i64: 2, 1, 32>}, {pipeline_mode = #tpu.pipeline_mode<synchronous>, transform_indices = @transform_2, window_bounds = array<i64: 1, 32>}, {transform_indices = @transform_3, window_bounds = array<i64: 32, 128>}, {transform_indices = @transform_4, window_bounds = array<i64: 1, 1, 128>}, {transform_indices = @transform_5, window_bounds = array<i64: 1, 8, 128>}]} {
    %c0_i32 = arith.constant 0 : i32
    %0 = arith.cmpi eq, %arg1, %c0_i32 : i32
    %c0_i32_0 = arith.constant 0 : i32
    %1 = arith.cmpi eq, %arg2, %c0_i32_0 : i32
    %2 = arith.andi %0, %1 : i1
    %3 = arith.extui %2 : i1 to i32
    %c0_i32_1 = arith.constant 0 : i32
    %4 = arith.cmpi ne, %3, %c0_i32_1 : i32
    scf.if %4 {
      %c0_13 = arith.constant 0 : index
      %c0_14 = arith.constant 0 : index
      %20 = vector.load %arg3[%c0_13, %c0_14] : memref<8x32xf32, #tpu.memory_space<vmem>>, vector<8x32xf32>
      %cst_15 = arith.constant dense<0.000000e+00> : vector<8xf32>
      %21 = vector.multi_reduction <add>, %20, %cst_15 [1] : vector<8x32xf32> to vector<8xf32>
      %22 = vector.shape_cast %21 : vector<8xf32> to vector<8x1xf32>
      %cst_16 = arith.constant 3.200000e+01 : f32
      %23 = vector.broadcast %cst_16 : f32 to vector<8x1xf32>
      %24 = arith.divf %22, %23 : vector<8x1xf32>
      %25 = vector.broadcast %24 : vector<8x1xf32> to vector<8x32xf32>
      %26 = arith.subf %20, %25 : vector<8x32xf32>
      %27 = arith.mulf %26, %26 : vector<8x32xf32>
      %cst_17 = arith.constant dense<0.000000e+00> : vector<8xf32>
      %28 = vector.multi_reduction <add>, %27, %cst_17 [1] : vector<8x32xf32> to vector<8xf32>
      %29 = vector.shape_cast %28 : vector<8xf32> to vector<8x1xf32>
      %cst_18 = arith.constant 3.200000e+01 : f32
      %30 = vector.broadcast %cst_18 : f32 to vector<8x1xf32>
      %31 = arith.divf %29, %30 : vector<8x1xf32>
      %32 = vector.broadcast %24 : vector<8x1xf32> to vector<8x32xf32>
      %33 = arith.subf %20, %32 : vector<8x32xf32>
      %cst_19 = arith.constant 9.99999974E-6 : f32
      %34 = vector.broadcast %cst_19 : f32 to vector<8x1xf32>
      %35 = arith.addf %31, %34 : vector<8x1xf32>
      %36 = math.rsqrt %35 : vector<8x1xf32>
      %37 = vector.broadcast %36 : vector<8x1xf32> to vector<8x32xf32>
      %38 = arith.mulf %33, %37 : vector<8x32xf32>
      %c0_20 = arith.constant 0 : index
      %c0_21 = arith.constant 0 : index
      %39 = vector.load %arg5[%c0_20, %c0_21] : memref<1x32xf32, #tpu.memory_space<vmem>>, vector<1x32xf32>
      %40 = vector.broadcast %39 : vector<1x32xf32> to vector<8x32xf32>
      %41 = arith.mulf %38, %40 : vector<8x32xf32>
      %c0_22 = arith.constant 0 : index
      %c0_23 = arith.constant 0 : index
      %42 = vector.load %arg9[%c0_22, %c0_23] : memref<8x32xf32, #tpu.memory_space<vmem>>, vector<8x32xf32>
      tpu.vector_store %arg9[%c0_22, %c0_23], %41 {strides = array<i32>} : memref<8x32xf32, #tpu.memory_space<vmem>>, vector<8x32xf32>,
    } else {
    }
    %c0 = arith.constant 0 : index
    %c0_2 = arith.constant 0 : index
    %5 = vector.load %arg9[%c0, %c0_2] : memref<8x32xf32, #tpu.memory_space<vmem>>, vector<8x32xf32>
    %6 = arith.index_cast %arg2 : i32 to index
    %c0_3 = arith.constant 0 : index
    %c0_4 = arith.constant 0 : index
    %7 = vector.load %arg4[%6, %c0_3, %c0_4] : memref<2x1x32xf32, #tpu.memory_space<vmem>>, vector<1x1x32xf32>
    %8 = vector.shape_cast %7 : vector<1x1x32xf32> to vector<1x32xf32>
    %9 = vector.broadcast %8 : vector<1x32xf32> to vector<8x32xf32>
    %10 = arith.mulf %5, %9 : vector<8x32xf32>
    %c0_5 = arith.constant 0 : index
    %c0_6 = arith.constant 0 : index
    %11 = vector.load %arg6[%c0_5, %c0_6] : memref<32x128xf32, #tpu.memory_space<vmem>>, vector<32x128xf32>
    %cst = arith.constant dense<0.000000e+00> : vector<8x128xf32>
    %12 = tpu.matmul %10, %11, %cst {dimension_numbers = #tpu.dot_dimension_numbers<[1], [0], [0], [1], [0, 0, 1, 1], [], []>} : vector<8x32xf32>, vector<32x128xf32>, vector<8x128xf32> -> vector<8x128xf32>
    %c0_7 = arith.constant 0 : index
    %c0_8 = arith.constant 0 : index
    %c0_9 = arith.constant 0 : index
    %13 = vector.load %arg7[%c0_7, %c0_8, %c0_9] : memref<1x1x128xf32, #tpu.memory_space<vmem>>, vector<1x1x128xf32>
    %14 = vector.shape_cast %13 : vector<1x1x128xf32> to vector<1x128xf32>
    %15 = vector.broadcast %14 : vector<1x128xf32> to vector<8x128xf32>
    %16 = arith.addf %12, %15 : vector<8x128xf32>
    %c0_10 = arith.constant 0 : index
    %c0_11 = arith.constant 0 : index
    %c0_12 = arith.constant 0 : index
    %17 = vector.load %arg8[%c0_10, %c0_11, %c0_12] : memref<1x8x128xf32, #tpu.memory_space<vmem>>, vector<1x8x128xf32>
    %18 = vector.shape_cast %17 : vector<1x8x128xf32> to vector<8x128xf32>
    %19 = vector.shape_cast %16 : vector<8x128xf32> to vector<1x8x128xf32>
    tpu.vector_store %arg8[%c0_10, %c0_11, %c0_12], %19 {strides = array<i32>} : memref<1x8x128xf32, #tpu.memory_space<vmem>>, vector<1x8x128xf32>,
    return
  }
  func.func @transform_0(%arg0: i32, %arg1: i32, %arg2: i32) -> (i32, i32) {
    %c0_i32 = arith.constant 0 : i32
    %c0_i32_0 = arith.constant 0 : i32
    return %arg0, %c0_i32 : i32, i32
  }
  func.func @transform_1(%arg0: i32, %arg1: i32, %arg2: i32) -> (i32, i32, i32) {
    %c0_i32 = arith.constant 0 : i32
    %c0_i32_0 = arith.constant 0 : i32
    %c0_i32_1 = arith.constant 0 : i32
    %c0_i32_2 = arith.constant 0 : i32
    return %c0_i32, %c0_i32_0, %c0_i32_1 : i32, i32, i32
  }
  func.func @transform_2(%arg0: i32, %arg1: i32, %arg2: i32) -> (i32, i32) {
    %c0_i32 = arith.constant 0 : i32
    %c0_i32_0 = arith.constant 0 : i32
    %c0_i32_1 = arith.constant 0 : i32
    return %c0_i32, %c0_i32_0 : i32, i32
  }
  func.func @transform_3(%arg0: i32, %arg1: i32, %arg2: i32) -> (i32, i32) {
    %c0_i32 = arith.constant 0 : i32
    %c0_i32_0 = arith.constant 0 : i32
    return %c0_i32, %arg1 : i32, i32
  }
  func.func @transform_4(%arg0: i32, %arg1: i32, %arg2: i32) -> (i32, i32, i32) {
    %c0_i32 = arith.constant 0 : i32
    %c0_i32_0 = arith.constant 0 : i32
    return %arg2, %c0_i32, %arg1 : i32, i32, i32
  }
  func.func @transform_5(%arg0: i32, %arg1: i32, %arg2: i32) -> (i32, i32, i32) {
    %c0_i32 = arith.constant 0 : i32
    return %arg2, %arg0, %arg1 : i32, i32, i32
  }
}

</mosaic_0001>

<llo_original>
// kernel: _ddit_final_apply.1
$region0: #{_ddit_final_apply.1}
  #allocation0 [shape = 'u32[]', space=smem, size = 0x4, offset = 0x4, fixed_abs, tag = 'smem constant byte address 0x4 - core index']
  #allocation1 [shape = 'u32[144,128]{1,0:T(1,128)}', space=vmem, size = 0x12000, scoped, tag = 'internal scratch']
  #allocation2 [shape = 'f32[8,32]{1,0:T(8,128)}', space=vmem, size = 0x1000, scoped, tag = 'scratch operand']
  %s0 = inlined_call_operand.vmem [shape: f32[16,32], index: 0, kind: input, shape index: {}]
  %s1 = inlined_call_operand.vmem [shape: f32[2,1,32], index: 1, kind: input, shape index: {}]
  %s2 = inlined_call_operand.vmem [shape: f32[1,32], index: 2, kind: input, shape index: {}]
  %s3 = inlined_call_operand.vmem [shape: f32[32,128], index: 3, kind: input, shape index: {}]
  %s4 = inlined_call_operand.vmem [shape: f32[2,1,128], index: 4, kind: input, shape index: {}]
  %s5 = inlined_call_operand.vmem [shape: f32[2,16,128], index: 5, kind: output, shape index: {}]
  %s6 = sld [smem:[#allocation0]]
  $region57: #{_ddit_final_apply.1} parent=0
    _
  %s8 = ssub.s32 1, %s6
  %s9 = scalar_select 0, %s8, %s6
  loop: start=0, step=1, limit=6
  $region2: #{_ddit_final_apply.1} parent=0 // loop_pre_header
    _
  $region3: #{_ddit_final_apply.1} parent=0 // loop_header
    %s11 = sphi 0, %s15
    %p12 = scmp.ge.s32.totalorder %s11, 6
    %s18 = sphi 0, %s37
    %s19 = sphi 0, %s33
    %s20 = sphi 0, %s29
    %s21 = sphi 0, %s18
    %s22 = sphi 0, %s19
    %s23 = sphi 0, %s20
    %s24 = sphi 0, %s21
    %s25 = sphi 0, %s22
    %s26 = sphi 0, %s23
    %s40 = sphi 0, %s42
    %s43 = sphi 0, %s40
    %s44 = sphi 0, %s43
    %s60 = sphi 0, %s44
    %s64 = sphi 0, %s64
    %s66 = sphi 0, %s64
    %s67 = sphi 0, %s66
    %s81 = sphi 0, %s67
    %s85 = sphi 0, %s85
    %s87 = sphi 0, %s85
    %s88 = sphi 0, %s87
    %s102 = sphi 0, %s88
    %s108 = sphi 0, %s110
    %s111 = sphi 0, %s108
    %s112 = sphi 0, %s111
    %s128 = sphi 0, %s112
    %s136 = sphi 0, %s138
    %s139 = sphi 0, %s136
    %s140 = sphi 0, %s139
    %s156 = sphi 0, %s140
    %s166 = sphi 0, %s168
    %s169 = sphi 0, %s166
    %s170 = sphi 0, %s169
    %s186 = sphi 0, %s170
  $region4: #{_ddit_final_apply.1} parent=0 // loop_header_branch
    %14 = sbr.rel (%p12) target = $region8
  $region5: #{_ddit_final_apply.1} parent=0 // loop_body
    %s16 = ssub.s32 %s11, 1
    %s17 = ssub.s32 %s11, 2
    %s27 = sadd.s32 1, %s20
    %p28 = scmp.ge.s32.totalorder %s27, 2
    %s29 = scalar_select %p28, 0, %s27
    %s30 = sadd.s32 1, %s19
    %s31 = scalar_select %p28, %s30, %s19
    %p32 = scmp.ge.s32.totalorder %s31, 1
    %s33 = scalar_select %p32, 0, %s31
    %s34 = sadd.s32 1, %s18
    %s35 = scalar_select %p32, %s34, %s18
    %p36 = scmp.ge.s32.totalorder %s35, 2
    %s37 = scalar_select %p36, 0, %s35
    %s38 = ssub.s32 %s18, %s37
    %p39 = scmp.eq.s32.totalorder %s38, 0
    %s41 = sadd.s32 %s40, 1
    %s42 = scalar_select %p39, %s40, %s41
    %p45 = pneg %p39
    %p46 = scmp.eq.s32.totalorder %s11, 3
    %p47 = por %p45, %p46
    %p48 = scmp.ne.s32.totalorder %s40, %s43
    %p49 = scmp.eq.s32.totalorder %s11, 0
    %p50 = por %p48, %p49
    %p51 = scmp.ne.s32.totalorder %s40, %s43
    %p52 = scmp.eq.s32.totalorder %s16, 3
    %p53 = por %p51, %p52
    %p54 = scmp.ne.s32.totalorder %s43, %s44
    %p55 = scmp.eq.s32.totalorder %s16, 0
    %p56 = por %p54, %p55
    %p57 = scmp.ne.s32.totalorder %s43, %s44
    %p58 = scmp.eq.s32.totalorder %s17, 3
    %p59 = por %p57, %p58
    %p61 = scmp.ne.s32.totalorder %s44, %s60
    %p62 = scmp.eq.s32.totalorder %s17, 0
    %p63 = por %p61, %p62
    %s65 = sadd.s32 %s64, 1
    %p68 = scmp.eq.s32.totalorder %s11, 3
    %p69 = scmp.ne.s32.totalorder %s64, %s66
    %p70 = scmp.eq.s32.totalorder %s11, 0
    %p71 = por %p69, %p70
    %p72 = scmp.ne.s32.totalorder %s64, %s66
    %p73 = scmp.eq.s32.totalorder %s16, 3
    %p74 = por %p72, %p73
    %p75 = scmp.ne.s32.totalorder %s66, %s67
    %p76 = scmp.eq.s32.totalorder %s16, 0
    %p77 = por %p75, %p76
    %p78 = scmp.ne.s32.totalorder %s66, %s67
    %p79 = scmp.eq.s32.totalorder %s17, 3
    %p80 = por %p78, %p79
    %p82 = scmp.ne.s32.totalorder %s67, %s81
    %p83 = scmp.eq.s32.totalorder %s17, 0
    %p84 = por %p82, %p83
    %s86 = sadd.s32 %s85, 1
    %p89 = scmp.eq.s32.totalorder %s11, 3
    %p90 = scmp.ne.s32.totalorder %s85, %s87
    %p91 = scmp.eq.s32.totalorder %s11, 0
    %p92 = por %p90, %p91
    %p93 = scmp.ne.s32.totalorder %s85, %s87
    %p94 = scmp.eq.s32.totalorder %s16, 3
    %p95 = por %p93, %p94
    %p96 = scmp.ne.s32.totalorder %s87, %s88
    %p97 = scmp.eq.s32.totalorder %s16, 0
    %p98 = por %p96, %p97
    %p99 = scmp.ne.s32.totalorder %s87, %s88
    %p100 = scmp.eq.s32.totalorder %s17, 3
    %p101 = por %p99, %p100
    %p103 = scmp.ne.s32.totalorder %s88, %s102
    %p104 = scmp.eq.s32.totalorder %s17, 0
    %p105 = por %p103, %p104
    %s106 = ssub.s32 %s19, %s33
    %p107 = scmp.eq.s32.totalorder %s106, 0
    %s109 = sadd.s32 %s108, 1
    %s110 = scalar_select %p107, %s108, %s109
    %p113 = pneg %p107
    %p114 = scmp.eq.s32.totalorder %s11, 3
    %p115 = por %p113, %p114
    %p116 = scmp.ne.s32.totalorder %s108, %s111
    %p117 = scmp.eq.s32.totalorder %s11, 0
    %p118 = por %p116, %p117
    %p119 = scmp.ne.s32.totalorder %s108, %s111
    %p120 = scmp.eq.s32.totalorder %s16, 3
    %p121 = por %p119, %p120
    %p122 = scmp.ne.s32.totalorder %s111, %s112
    %p123 = scmp.eq.s32.totalorder %s16, 0
    %p124 = por %p122, %p123
    %p125 = scmp.ne.s32.totalorder %s111, %s112
    %p126 = scmp.eq.s32.totalorder %s17, 3
    %p127 = por %p125, %p126
    %p129 = scmp.ne.s32.totalorder %s112, %s128
    %p130 = scmp.eq.s32.totalorder %s17, 0
    %p131 = por %p129, %p130
    %s132 = ssub.s32 %s20, %s29
    %s133 = ssub.s32 %s19, %s33
    %s134 = sor.u32 %s132, %s133
    %p135 = scmp.eq.s32.totalorder %s134, 0
    %s137 = sadd.s32 %s136, 1
    %s138 = scalar_select %p135, %s136, %s137
    %p141 = pneg %p135
    %p142 = scmp.eq.s32.totalorder %s11, 3
    %p143 = por %p141, %p142
    %p144 = scmp.ne.s32.totalorder %s136, %s139
    %p145 = scmp.eq.s32.totalorder %s11, 0
    %p146 = por %p144, %p145
    %p147 = scmp.ne.s32.totalorder %s136, %s139
    %p148 = scmp.eq.s32.totalorder %s16, 3
    %p149 = por %p147, %p148
    %p150 = scmp.ne.s32.totalorder %s139, %s140
    %p151 = scmp.eq.s32.totalorder %s16, 0
    %p152 = por %p150, %p151
    %p153 = scmp.ne.s32.totalorder %s139, %s140
    %p154 = scmp.eq.s32.totalorder %s17, 3
    %p155 = por %p153, %p154
    %p157 = scmp.ne.s32.totalorder %s140, %s156
    %p158 = scmp.eq.s32.totalorder %s17, 0
    %p159 = por %p157, %p158
    %s160 = ssub.s32 %s20, %s29
    %s161 = ssub.s32 %s18, %s37
    %s162 = sor.u32 %s160, %s161
    %s163 = ssub.s32 %s19, %s33
    %s164 = sor.u32 %s162, %s163
    %p165 = scmp.eq.s32.totalorder %s164, 0
    %s167 = sadd.s32 %s166, 1
    %s168 = scalar_select %p165, %s166, %s167
    %p171 = pneg %p165
    %p172 = scmp.eq.s32.totalorder %s11, 3
    %p173 = por %p171, %p172
    %p174 = scmp.ne.s32.totalorder %s166, %s169
    %p175 = scmp.eq.s32.totalorder %s11, 0
    %p176 = por %p174, %p175
    %p177 = scmp.ne.s32.totalorder %s166, %s169
    %p178 = scmp.eq.s32.totalorder %s16, 3
    %p179 = por %p177, %p178
    %p180 = scmp.ne.s32.totalorder %s169, %s170
    %p181 = scmp.eq.s32.totalorder %s16, 0
    %p182 = por %p180, %p181
    %p183 = scmp.ne.s32.totalorder %s169, %s170
    %p184 = scmp.eq.s32.totalorder %s17, 3
    %p185 = por %p183, %p184
    %p187 = scmp.ne.s32.totalorder %s170, %s186
    %p188 = scmp.eq.s32.totalorder %s17, 0
    %p189 = por %p187, %p188
    %p190 = scmp.le.s32.totalorder 1, %s11
    %p191 = scmp.lt.s32.totalorder %s11, 5
    %p192 = pnand %p190, %p191
    %p193 = pneg %p192
    // Predicated region
    $region9: #{_ddit_final_apply.1} parent=5 // pred_check
      _
    $region10: #{_ddit_final_apply.1} parent=5 // pred_check_branch
      %195 = sbr.rel (%p192) target = $region12
    $region11: #{_ddit_final_apply.1} parent=5 // pred_region
      %s196 = ssub.s32 %s11, 1
      // Predicated region
      $region13: #{_ddit_final_apply.1} parent=11 // pred_check
        %p197 = pneg %p77
      $region14: #{_ddit_final_apply.1} parent=11 // pred_check_branch
        %199 = sbr.rel (%p197) target = $region16
      $region15: #{_ddit_final_apply.1} parent=11 // pred_region
        _
      $region16: #{_ddit_final_apply.1} parent=11 // pred_fallthru
        _
      // Predicated region
      $region17: #{_ddit_final_apply.1} parent=11 // pred_check
        %p200 = pneg %p98
      $region18: #{_ddit_final_apply.1} parent=11 // pred_check_branch
        %202 = sbr.rel (%p200) target = $region20
      $region19: #{_ddit_final_apply.1} parent=11 // pred_region
        _
      $region20: #{_ddit_final_apply.1} parent=11 // pred_fallthru
        _
      // Predicated region
      $region21: #{_ddit_final_apply.1} parent=11 // pred_check
        %p203 = pneg %p124
      $region22: #{_ddit_final_apply.1} parent=11 // pred_check_branch
        %205 = sbr.rel (%p203) target = $region24
      $region23: #{_ddit_final_apply.1} parent=11 // pred_region
        %p206 = scmp.lt.s32.totalorder %s22, 0
        %s207 = scalar_select %p206, %s22, 0
        %s208 = smul.addr %s207, 8
        %s209 = scalar_lea.vmem %s3, %s208
      $region24: #{_ddit_final_apply.1} parent=11 // pred_fallthru
        _
    $region12: #{_ddit_final_apply.1} parent=5 // pred_fallthru
      _
    %p210 = scmp.lt.s32.totalorder %s11, 4
    // Predicated region
    $region25: #{_ddit_final_apply.1} parent=5 // pred_check
      %p211 = pneg %p210
    $region26: #{_ddit_final_apply.1} parent=5 // pred_check_branch
      %213 = sbr.rel (%p211) target = $region28
    $region27: #{_ddit_final_apply.1} parent=5 // pred_region
      // Predicated region
      $region29: #{_ddit_final_apply.1} parent=27 // pred_check
        %p214 = pneg %p50
      $region30: #{_ddit_final_apply.1} parent=27 // pred_check_branch
        %216 = sbr.rel (%p214) target = $region32
      $region31: #{_ddit_final_apply.1} parent=27 // pred_region
        %p217 = scmp.lt.s32.totalorder %s18, 1
        %s218 = scalar_select %p217, %s18, 1
        %s219 = smul.addr %s218, 8
        %s220 = scalar_lea.vmem %s0, %s219
      $region32: #{_ddit_final_apply.1} parent=27 // pred_fallthru
        _
      // Predicated region
      $region33: #{_ddit_final_apply.1} parent=27 // pred_check
        %p221 = pneg %p146
      $region34: #{_ddit_final_apply.1} parent=27 // pred_check_branch
        %223 = sbr.rel (%p221) target = $region36
      $region35: #{_ddit_final_apply.1} parent=27 // pred_region
        %p224 = scmp.lt.s32.totalorder %s20, 1
        %s225 = scalar_select %p224, %s20, 1
        %p226 = scmp.lt.s32.totalorder %s19, 0
        %s227 = scalar_select %p226, %s19, 0
        %s228 = sadd.s32 %s227, %s225
        %s229 = scalar_lea.vmem %s4, %s228
      $region36: #{_ddit_final_apply.1} parent=27 // pred_fallthru
        _
    $region28: #{_ddit_final_apply.1} parent=5 // pred_fallthru
      _
    %p230 = scmp.le.s32.totalorder 1, %s11
    %p231 = scmp.lt.s32.totalorder %s11, 5
    %p232 = pnand %p230, %p231
    %p233 = pneg %p232
    // Predicated region
    $region37: #{_ddit_final_apply.1} parent=5 // pred_check
      _
    $region38: #{_ddit_final_apply.1} parent=5 // pred_check_branch
      %235 = sbr.rel (%p232) target = $region40
    $region39: #{_ddit_final_apply.1} parent=5 // pred_region
      %s236 = ssub.s32 %s11, 1
      %p237 = scmp.lt.s32.totalorder %s21, 1
      %s238 = scalar_select %p237, %s21, 1
      %s239 = smul.addr %s238, 8
      %s240 = scalar_lea.vmem %s0, %s239
      %p241 = pneg %p56
      %p242 = pneg %p53
      %p243 = pneg %p77
      %p244 = pneg %p74
      %p245 = pneg %p98
      %p246 = pneg %p95
      %p247 = scmp.lt.s32.totalorder %s22, 0
      %s248 = scalar_select %p247, %s22, 0
      %s249 = smul.addr %s248, 8
      %s250 = scalar_lea.vmem %s3, %s249
      %p251 = pneg %p124
      %p252 = pneg %p121
      %p253 = scmp.lt.s32.totalorder %s23, 1
      %s254 = scalar_select %p253, %s23, 1
      %p255 = scmp.lt.s32.totalorder %s22, 0
      %s256 = scalar_select %p255, %s22, 0
      %s257 = sadd.s32 %s256, %s254
      %s258 = scalar_lea.vmem %s4, %s257
      %p259 = pneg %p152
      %p260 = pneg %p149
      %p261 = pneg %p182
      %p262 = pneg %p179
      %p263 = scmp.lt.s32.totalorder %s23, 1
      %s264 = scalar_select %p263, %s23, 1
      %p265 = scmp.lt.s32.totalorder %s21, 1
      %s266 = scalar_select %p265, %s21, 1
      %p267 = scmp.lt.s32.totalorder %s22, 0
      %s268 = scalar_select %p267, %s22, 0
      %s269 = sadd.s32 %s268, %s266
      %s270 = smul.addr %s264, 2
      %s271 = sadd.s32 %s269, %s270
      %s272 = smul.addr %s271, 8
      %s273 = scalar_lea.vmem %s5, %s272
      %p274 = scmp.lt.s32.totalorder %s21, 1
      %s275 = scalar_select %p274, %s21, 1
      %s276 = smul.addr %s275, 8
      %s277 = scalar_lea.vmem %s0, %s276
      %p278 = scmp.lt.s32.totalorder %s22, 0
      %s279 = scalar_select %p278, %s22, 0
      %s280 = smul.addr %s279, 8
      %s281 = scalar_lea.vmem %s3, %s280
      %p282 = scmp.lt.s32.totalorder %s23, 1
      %s283 = scalar_select %p282, %s23, 1
      %p284 = scmp.lt.s32.totalorder %s22, 0
      %s285 = scalar_select %p284, %s22, 0
      %s286 = sadd.s32 %s285, %s283
      %s287 = scalar_lea.vmem %s4, %s286
      %p288 = scmp.lt.s32.totalorder %s23, 1
      %s289 = scalar_select %p288, %s23, 1
      %p290 = scmp.lt.s32.totalorder %s21, 1
      %s291 = scalar_select %p290, %s21, 1
      %p292 = scmp.lt.s32.totalorder %s22, 0
      %s293 = scalar_select %p292, %s22, 0
      %s294 = sadd.s32 %s293, %s291
      %s295 = smul.addr %s289, 2
      %s296 = sadd.s32 %s294, %s295
      %s297 = smul.addr %s296, 8
      %s298 = scalar_lea.vmem %s5, %s297
      %p299 = scmp.eq.s32.totalorder %s22, 0
      %p300 = scmp.eq.s32.totalorder %s23, 0
      %p301 = pnand %p299, %p300
      %p302 = pneg %p301
      // Predicated region
      $region41: #{_ddit_final_apply.1} parent=39 // pred_check
        _
      $region42: #{_ddit_final_apply.1} parent=39 // pred_check_branch
        %304 = sbr.rel (%p301) target = $region44
      $region43: #{_ddit_final_apply.1} parent=39 // pred_region
        %v305 = vld [vmem:[%s277] sm:$0xff]
        %vm306 = vcmask 261120
        %v307 = vsel %vm306, %v305, 0.0
        %308 = vadd.xlane.f32.xlu0 %v307
        %v309 = vpop.xlane.xlu0 %308
        %v310 = vrcp.pop 32.0
        %v311 = vmul.f32 %v309, %v310
        %v312 = vsub.f32 %v305, %v311
        %v313 = vmul.f32 %v312, %v312
        %v314 = vsel %vm306, %v313, 0.0
        %315 = vadd.xlane.f32.xlu0 %v314
        %v316 = vpop.xlane.xlu0 %315
        %v317 = vmul.f32 %v316, %v310
        %v318 = vadd.f32 %v317, 1e-05
        %v319 = vrsqrt.pop %v318
        %v320 = vmul.f32 %v312, %v319
        %v321 = vld [vmem:[%s2] sm:$0x1]
        %v323 = vlaneseq
        %v324 = vshrl.u32 %v323, 7
        %v325 = vsub.s32 0, %v324
        %v326 = vrot.slane %v321, %v325
        %v328 = vmul.f32 %v320, %v326
        %329 = vst.msk [vmem:[#allocation2] sm:$0xff] %vm306, %v328
      $region44: #{_ddit_final_apply.1} parent=39 // pred_fallthru
        _
      %v330 = vld [vmem:[#allocation2] sm:$0xff]
      %s331 = scalar_lea.vmem %s1, %s23
      %v332 = vld [vmem:[%s331] sm:$0x1]
      %v334 = vlaneseq
      %v335 = vshrl.u32 %v334, 7
      %v336 = vsub.s32 0, %v335
      %v337 = vrot.slane %v332, %v336
      %v339 = vmul.f32 %v330, %v337
      %v340 = vld [vmem:[%s281] sm:$0xff]
      %v341 = vld [vmem:[%s281 + $0x8] sm:$0xff]
      %v342 = vld [vmem:[%s281 + $0x10] sm:$0xff]
      %v343 = vld [vmem:[%s281 + $0x18] sm:$0xff]
      %v344 = vld [vmem:[%s287] sm:$0x1]
      %v346 = vlaneseq
      %v347 = vshrl.u32 %v346, 7
      %v348 = vsub.s32 0, %v347
      %v349 = vrot.slane %v344, %v348
      %vm351 = vcmask 261120
      %v353 = vsel %vm351, %v339, 0
      %355 = vmatprep.subr.mxu0 0.0
      %356 = vmatpush1.msra.mxu0 %v340
      %357 = vmatprep.subr.mxu0 0.0
      %358 = vmatpush1.msra.mxu0 %v341
      %359 = vmatprep.subr.mxu0 0.0
      %360 = vmatpush1.msra.mxu0 %v342
      %361 = vmatprep.subr.mxu0 0.0
      %362 = vmatpush1.msra.mxu0 %v343
      %363 = vmatprep.subr.mxu0 0.0
      %364 = vmatpush1.msra.mxu0 0.0
      %365 = vmatprep.subr.mxu0 0.0
      %366 = vmatpush1.msra.mxu0 0.0
      %367 = vmatprep.subr.mxu0 0.0
      %368 = vmatpush1.msra.mxu0 0.0
      %369 = vmatprep.subr.mxu0 0.0
      %370 = vmatpush1.msra.mxu0 0.0
      %371 = vmatprep.subr.mxu0 0.0
      %372 = vmatpush1.msra.mxu0 0.0
      %373 = vmatprep.subr.mxu0 0.0
      %374 = vmatpush1.msra.mxu0 0.0
      %375 = vmatprep.subr.mxu0 0.0
      %376 = vmatpush1.msra.mxu0 0.0
      %377 = vmatprep.subr.mxu0 0.0
      %378 = vmatpush1.msra.mxu0 0.0
      %379 = vmatprep.subr.mxu0 0.0
      %380 = vmatpush1.msra.mxu0 0.0
      %381 = vmatprep.subr.mxu0 0.0
      %382 = vmatpush1.msra.mxu0 0.0
      %383 = vmatprep.subr.mxu0 0.0
      %384 = vmatpush1.msra.mxu0 0.0
      %385 = vmatprep.subr.mxu0 0.0
      %386 = vmatpush1.msra.mxu0 0.0
      %387 = vmatprep.subr.mxu0 0.0
      %388 = vmatpush1.msra.mxu0 0.0
      %389 = vmatprep.subr.mxu0 0.0
      %390 = vmatpush1.msra.mxu0 0.0
      %391 = vmatprep.subr.mxu0 0.0
      %392 = vmatpush1.msra.mxu0 0.0
      %393 = vmatprep.subr.mxu0 0.0
      %394 = vmatpush1.msra.mxu0 0.0
      %395 = vmatprep.subr.mxu0 0.0
      %396 = vmatpush1.msra.mxu0 0.0
      %397 = vmatprep.subr.mxu0 0.0
      %398 = vmatpush1.msra.mxu0 0.0
      %399 = vmatprep.subr.mxu0 0.0
      %400 = vmatpush1.msra.mxu0 0.0
      %401 = vmatprep.subr.mxu0 0.0
      %402 = vmatpush1.msra.mxu0 0.0
      %403 = vmatprep.subr.mxu0 0.0
      %404 = vmatpush1.msra.mxu0 0.0
      %405 = vmatprep.subr.mxu0 0.0
      %406 = vmatpush1.msra.mxu0 0.0
      %407 = vmatprep.subr.mxu0 0.0
      %408 = vmatpush1.msra.mxu0 0.0
      %409 = vmatprep.subr.mxu0 0.0
      %410 = vmatpush1.msra.mxu0 0.0
      %411 = vmatprep.subr.mxu0 0.0
      %412 = vmatpush1.msra.mxu0 0.0
      %413 = vmatprep.subr.mxu0 0.0
      %414 = vmatpush1.msra.mxu0 0.0
      %415 = vmatprep.subr.mxu0 0.0
      %416 = vmatpush1.msra.mxu0 0.0
      %417 = vmatprep.subr.mxu0 0.0
      %418 = vmatpush1.msra.mxu0 0.0
      %419 = vmatprep.mubr.f32.mxu0 0.0
      %420 = vmatmul.mubr.f32.gmra.mrb[0].mxu0 %v353
      %v421 = vpop.f32.mrb[0].mxu0
      %v422 = vadd.f32 %v349, %v421
      %v423 = vpop.f32.mrb[0].mxu0
      %424 = vdwg.mxu0
      %425 = vst [vmem:[%s298] sm:$0xff] %v422
      %p426 = scmp.lt.s32.totalorder %s23, 1
      %s427 = scalar_select %p426, %s23, 1
      %p428 = scmp.lt.s32.totalorder %s21, 1
      %s429 = scalar_select %p428, %s21, 1
      %p430 = scmp.lt.s32.totalorder %s22, 0
      %s431 = scalar_select %p430, %s22, 0
      %s432 = sadd.s32 %s431, %s429
      %s433 = smul.addr %s427, 2
      %s434 = sadd.s32 %s432, %s433
      %s435 = smul.addr %s434, 8
      %s436 = scalar_lea.vmem %s5, %s435
      // Predicated region
      $region45: #{_ddit_final_apply.1} parent=39 // pred_check
        %p437 = pneg %p179
      $region46: #{_ddit_final_apply.1} parent=39 // pred_check_branch
        %439 = sbr.rel (%p437) target = $region48
      $region47: #{_ddit_final_apply.1} parent=39 // pred_region
        _
      $region48: #{_ddit_final_apply.1} parent=39 // pred_fallthru
        _
    $region40: #{_ddit_final_apply.1} parent=5 // pred_fallthru
      _
    %p440 = scmp.le.s32.totalorder 2, %s11
    // Predicated region
    $region49: #{_ddit_final_apply.1} parent=5 // pred_check
      %p441 = pneg %p440
    $region50: #{_ddit_final_apply.1} parent=5 // pred_check_branch
      %443 = sbr.rel (%p441) target = $region52
    $region51: #{_ddit_final_apply.1} parent=5 // pred_region
      %s444 = ssub.s32 %s11, 2
      // Predicated region
      $region53: #{_ddit_final_apply.1} parent=51 // pred_check
        %p445 = pneg %p185
      $region54: #{_ddit_final_apply.1} parent=51 // pred_check_branch
        %447 = sbr.rel (%p445) target = $region56
      $region55: #{_ddit_final_apply.1} parent=51 // pred_region
        %p448 = scmp.lt.s32.totalorder %s26, 1
        %s449 = scalar_select %p448, %s26, 1
        %p450 = scmp.lt.s32.totalorder %s24, 1
        %s451 = scalar_select %p450, %s24, 1
        %p452 = scmp.lt.s32.totalorder %s25, 0
        %s453 = scalar_select %p452, %s25, 0
        %s454 = sadd.s32 %s453, %s451
        %s455 = smul.addr %s449, 2
        %s456 = sadd.s32 %s454, %s455
        %s457 = smul.addr %s456, 8
        %s458 = scalar_lea.vmem %s5, %s457
      $region56: #{_ddit_final_apply.1} parent=51 // pred_fallthru
        _
    $region52: #{_ddit_final_apply.1} parent=5 // pred_fallthru
      _
  $region6: #{_ddit_final_apply.1} parent=0 // loop_footer
    %s15 = sadd.s32 1, %s11
  $region7: #{_ddit_final_apply.1} parent=0 // loop_footer_branch
    %10 = sbr.rel target = $region3
  $region8: #{_ddit_final_apply.1} parent=0 // loop_exit
    _

</llo_original>
